<compile_context>
chip_gen: v6e
topology: v6e:2x2x1
jax: 0.10.0
libtpu: 0.0.40
codegen_flags: <defaults>
</compile_context>

<pallas_src>
import jax
import jax.numpy as jnp
from jax.experimental import pallas as pl
from jax.experimental.pallas import tpu as pltpu


def _dist_head_kernel(x_ref, w_ref, b_ref, mu_ref, lv_ref):
    """Fused 1x1-conv head: one MXU matmul, split output rows into mu / logvar.

    x_ref:  (1, Cin, thw)  -- spatial axis on lanes (lane-dense)
    w_ref:  (Cout, Cin)    -- native PyTorch conv weight orientation
    b_ref:  (Cout, 1)
    mu_ref: (1, L, thw), lv_ref: (1, L, thw) with Cout = 2 * L.
    """
    L = mu_ref.shape[1]
    x = x_ref[0]  # (Cin, thw)
    y = jnp.dot(w_ref[...], x, preferred_element_type=jnp.float32) + b_ref[...]
    mu_ref[0] = y[:L].astype(mu_ref.dtype)
    lv_ref[0] = y[L:].astype(lv_ref.dtype)


def _pick_hw_tile(hw, cin, cout, dtype_bytes,
                  target_step_bytes=2 * 1024 * 1024,
                  vmem_tile_budget_bytes=24 * 1024 * 1024):
    """Pick a lane-dense (multiple-of-128) HW tile sized by bytes-per-step.

    Bytes moved per grid step = (cin + cout) * thw * dtype_bytes (input tile plus
    BOTH output tiles).  Target ~2 MiB/step (matches the measured knee where tiled
    mem-bound kernels reach ~85% of the HBM roofline) while keeping the
    double-buffered working set within a budget that is safe even for v7x's
    smaller VMEM.
    """
    per_lane_bytes = (cin + cout) * dtype_bytes
    thw_target = max(128, (target_step_bytes // per_lane_bytes) // 128 * 128)
    thw_cap = max(128, (vmem_tile_budget_bytes // (2 * per_lane_bytes)) // 128 * 128)
    thw = min(thw_target, thw_cap)
    if hw <= thw:
        return hw  # single full-extent block (legal for any hw, incl. non-128-multiple)
    return thw     # 128-multiple block; a partial last block is masked by Pallas


def dist_head_forward(x_nchw, weight, bias):
    """1x1-conv distribution head (used by both PriorNet and PosteriorNet).

    x_nchw: (B, Cin, H, W)
    weight: (Cout, Cin)  -- PyTorch conv weight (Cout, Cin, 1, 1) squeezed.
    bias:   (Cout,)         (Cout = 2 * latent_dim)
    Returns (mu, logvar), each (B, latent_dim, H, W).
    """
    B, Cin, H, W = x_nchw.shape
    Cout = weight.shape[0]
    assert Cout % 2 == 0
    L = Cout // 2
    HW = H * W
    dtype_bytes = jnp.dtype(x_nchw.dtype).itemsize

    # Free, contiguous reshape -- no transpose, no extra HBM round trip.
    x_flat = x_nchw.reshape(B, Cin, HW)
    b_col = bias.reshape(Cout, 1)

    thw = _pick_hw_tile(HW, Cin, Cout, dtype_bytes)
    num_hw_tiles = pl.cdiv(HW, thw)
    # v7x: guarantee >=2 steps along a "parallel" axis so both TensorCores work.
    if B == 1 and num_hw_tiles == 1 and HW >= 256:
        thw = (-(-((HW + 1) // 2) // 128)) * 128
        num_hw_tiles = pl.cdiv(HW, thw)

    # VMEM accounting includes the double-buffered outputs, not just the input.
    step_bytes = (Cin + Cout) * thw * dtype_bytes
    weight_bytes = (Cout * Cin + Cout) * jnp.dtype(weight.dtype).itemsize
    vmem_limit = max(16 * 1024 * 1024,
                     2 * step_bytes + 2 * weight_bytes + (4 << 20))

    out_dtype = x_nchw.dtype
    mu_flat, lv_flat = pl.pallas_call(
        _dist_head_kernel,
        out_shape=(
            jax.ShapeDtypeStruct((B, L, HW), out_dtype),
            jax.ShapeDtypeStruct((B, L, HW), out_dtype),
        ),
        grid_spec=pltpu.PrefetchScalarGridSpec(
            num_scalar_prefetch=0,
            grid=(B, num_hw_tiles),
            in_specs=[
                pl.BlockSpec((1, Cin, thw), lambda b, j: (b, 0, j)),
                pl.BlockSpec((Cout, Cin), lambda b, j: (0, 0)),
                pl.BlockSpec((Cout, 1), lambda b, j: (0, 0)),
            ],
            out_specs=[
                pl.BlockSpec((1, L, thw), lambda b, j: (b, 0, j)),
                pl.BlockSpec((1, L, thw), lambda b, j: (b, 0, j)),
            ],
        ),
        compiler_params=pltpu.CompilerParams(
            dimension_semantics=("parallel", "parallel"),
            vmem_limit_bytes=int(vmem_limit),
        ),
    )(x_flat, weight, b_col)

    mu = mu_flat.reshape(B, L, H, W)
    logvar = lv_flat.reshape(B, L, H, W)
    return mu, logvar


# Aliases matching the PyTorch module's two heads (identical computation).
prior_net_forward = dist_head_forward
posterior_net_forward = dist_head_forward


if __name__ == "__main__":
    # Small shapes consistent with the module head: batch=2, in_channels=4,
    # spatial=16x16, latent_dim=8 (so conv out_channels = 16).
    B, Cin, H, W = 2, 4, 16, 16
    latent_dim = 8
    Cout = 2 * latent_dim

    key = jax.random.PRNGKey(0)
    kx, kw, kb = jax.random.split(key, 3)

    x = jax.random.normal(kx, (B, Cin, H, W), dtype=jnp.float32)
    # Conv2d weight (Cout, Cin, 1, 1) stored squeezed as (Cout, Cin); bias (Cout,).
    weight = jax.random.normal(kw, (Cout, Cin), dtype=jnp.float32) * 0.1
    bias = jax.random.normal(kb, (Cout,), dtype=jnp.float32) * 0.01

    mu, logvar = dist_head_forward(x, weight, bias)
    jax.block_until_ready((mu, logvar))

    # Reference in plain JAX: 1x1 conv on NCHW, then channel split.
    ref = jnp.einsum("bchw,oc->bohw", x, weight) + bias[None, :, None, None]
    ref_mu, ref_logvar = ref[:, :latent_dim], ref[:, latent_dim:]
    assert mu.shape == (B, latent_dim, H, W)
    assert logvar.shape == (B, latent_dim, H, W)
    assert jnp.allclose(mu, ref_mu, atol=1e-5)
    assert jnp.allclose(logvar, ref_logvar, atol=1e-5)

    print("KERNEL_OK")
</pallas_src>

<mosaic_0001>
module attributes {stable_mosaic.version = 11 : i64} {
  func.func @_dist_head_kernel(%arg0: i32, %arg1: i32, %arg2: memref<1x4x256xf32, #tpu.memory_space<vmem>>, %arg3: memref<16x4xf32, #tpu.memory_space<vmem>>, %arg4: memref<16x1xf32, #tpu.memory_space<vmem>>, %arg5: memref<1x8x256xf32, #tpu.memory_space<vmem>>, %arg6: memref<1x8x256xf32, #tpu.memory_space<vmem>>) attributes {dimension_semantics = [#tpu.dimension_semantics<parallel>, #tpu.dimension_semantics<parallel>], iteration_bounds = array<i64: 2, 1>, scalar_prefetch = 0 : i64, scratch_operands = 0 : i64, tpu.core_type = #tpu.core_type<tc>, window_params = [{transform_indices = @transform_0, window_bounds = array<i64: 1, 4, 256>}, {pipeline_mode = #tpu.pipeline_mode<synchronous>, transform_indices = @transform_1, window_bounds = array<i64: 16, 4>}, {pipeline_mode = #tpu.pipeline_mode<synchronous>, transform_indices = @transform_2, window_bounds = array<i64: 16, 1>}, {transform_indices = @transform_3, window_bounds = array<i64: 1, 8, 256>}, {transform_indices = @transform_4, window_bounds = array<i64: 1, 8, 256>}]} {
    %c0 = arith.constant 0 : index
    %c0_0 = arith.constant 0 : index
    %c0_1 = arith.constant 0 : index
    %0 = vector.load %arg2[%c0, %c0_0, %c0_1] : memref<1x4x256xf32, #tpu.memory_space<vmem>>, vector<1x4x256xf32>
    %1 = vector.shape_cast %0 : vector<1x4x256xf32> to vector<4x256xf32>
    %c0_2 = arith.constant 0 : index
    %c0_3 = arith.constant 0 : index
    %2 = vector.load %arg3[%c0_2, %c0_3] : memref<16x4xf32, #tpu.memory_space<vmem>>, vector<16x4xf32>
    %cst = arith.constant dense<0.000000e+00> : vector<16x256xf32>
    %3 = tpu.matmul %2, %1, %cst {dimension_numbers = #tpu.dot_dimension_numbers<[1], [0], [0], [1], [0, 0, 1, 1], [], []>} : vector<16x4xf32>, vector<4x256xf32>, vector<16x256xf32> -> vector<16x256xf32>
    %c0_4 = arith.constant 0 : index
    %c0_5 = arith.constant 0 : index
    %4 = vector.load %arg4[%c0_4, %c0_5] : memref<16x1xf32, #tpu.memory_space<vmem>>, vector<16x1xf32>
    %5 = vector.broadcast %4 : vector<16x1xf32> to vector<16x256xf32>
    %6 = arith.addf %3, %5 : vector<16x256xf32>
    %7 = vector.extract_strided_slice %6 {offsets = [0, 0], sizes = [8, 256], strides = [1, 1]} : vector<16x256xf32> to vector<8x256xf32>
    %c0_6 = arith.constant 0 : index
    %c0_7 = arith.constant 0 : index
    %c0_8 = arith.constant 0 : index
    %8 = vector.load %arg5[%c0_6, %c0_7, %c0_8] : memref<1x8x256xf32, #tpu.memory_space<vmem>>, vector<1x8x256xf32>
    %9 = vector.shape_cast %8 : vector<1x8x256xf32> to vector<8x256xf32>
    %10 = vector.shape_cast %7 : vector<8x256xf32> to vector<1x8x256xf32>
    tpu.vector_store %arg5[%c0_6, %c0_7, %c0_8], %10 {strides = array<i32>} : memref<1x8x256xf32, #tpu.memory_space<vmem>>, vector<1x8x256xf32>,
    %11 = vector.extract_strided_slice %6 {offsets = [8, 0], sizes = [8, 256], strides = [1, 1]} : vector<16x256xf32> to vector<8x256xf32>
    %c0_9 = arith.constant 0 : index
    %c0_10 = arith.constant 0 : index
    %c0_11 = arith.constant 0 : index
    %12 = vector.load %arg6[%c0_9, %c0_10, %c0_11] : memref<1x8x256xf32, #tpu.memory_space<vmem>>, vector<1x8x256xf32>
    %13 = vector.shape_cast %12 : vector<1x8x256xf32> to vector<8x256xf32>
    %14 = vector.shape_cast %11 : vector<8x256xf32> to vector<1x8x256xf32>
    tpu.vector_store %arg6[%c0_9, %c0_10, %c0_11], %14 {strides = array<i32>} : memref<1x8x256xf32, #tpu.memory_space<vmem>>, vector<1x8x256xf32>,
    return
  }
  func.func @transform_0(%arg0: i32, %arg1: i32) -> (i32, i32, i32) {
    %c0_i32 = arith.constant 0 : i32
    %c0_i32_0 = arith.constant 0 : i32
    return %arg0, %c0_i32, %arg1 : i32, i32, i32
  }
  func.func @transform_1(%arg0: i32, %arg1: i32) -> (i32, i32) {
    %c0_i32 = arith.constant 0 : i32
    %c0_i32_0 = arith.constant 0 : i32
    %c0_i32_1 = arith.constant 0 : i32
    return %c0_i32, %c0_i32_0 : i32, i32
  }
  func.func @transform_2(%arg0: i32, %arg1: i32) -> (i32, i32) {
    %c0_i32 = arith.constant 0 : i32
    %c0_i32_0 = arith.constant 0 : i32
    %c0_i32_1 = arith.constant 0 : i32
    return %c0_i32, %c0_i32_0 : i32, i32
  }
  func.func @transform_3(%arg0: i32, %arg1: i32) -> (i32, i32, i32) {
    %c0_i32 = arith.constant 0 : i32
    %c0_i32_0 = arith.constant 0 : i32
    return %arg0, %c0_i32, %arg1 : i32, i32, i32
  }
  func.func @transform_4(%arg0: i32, %arg1: i32) -> (i32, i32, i32) {
    %c0_i32 = arith.constant 0 : i32
    %c0_i32_0 = arith.constant 0 : i32
    return %arg0, %c0_i32, %arg1 : i32, i32, i32
  }
}

</mosaic_0001>

<llo_original>
// kernel: tpu_custom_call.1
$region0: #{tpu_custom_call.1}
  #allocation0 [shape = 'u32[]', space=smem, size = 0x4, offset = 0x4, fixed_abs, tag = 'smem constant byte address 0x4 - core index']
  #allocation1 [shape = 'u32[144,128]{1,0:T(1,128)}', space=vmem, size = 0x12000, scoped, tag = 'internal scratch']
  %s0 = inlined_call_operand.vmem [shape: f32[2,4,256], index: 0, kind: input, shape index: {}]
  %s1 = inlined_call_operand.vmem [shape: f32[16,4], index: 1, kind: input, shape index: {}]
  %s2 = inlined_call_operand.vmem [shape: f32[16,1], index: 2, kind: input, shape index: {}]
  %s3 = inlined_call_operand.hbm [shape: f32[2,8,256], index: 3, kind: output, shape index: {0}]
  %s4 = inlined_call_operand.hbm [shape: f32[2,8,256], index: 4, kind: output, shape index: {1}]
  %5 = xla_tuple %s3, %s4
  %s6 = sld [smem:[#allocation0]]
  $region53: #{tpu_custom_call.1} parent=0
    _
  %s8 = ssub.s32 1, %s6
  %s9 = scalar_select 0, %s8, %s6
  $region1: #{tpu_custom_call.1} parent=0
    #allocation2 [shape = 'u8[16384]{0}', space=vmem, size = 0x4000, scoped, tag = 'output window, operand 0']
    #allocation3 [shape = 's32[2]{0}', space=sflag, size = 0x8, scoped, tag = 'scoped memory for tpu_custom_call.1']
    #allocation4 [shape = 'u8[16384]{0}', space=vmem, size = 0x4000, scoped, tag = 'output window, operand 1']
    #allocation5 [shape = 's32[2]{0}', space=sflag, size = 0x8, scoped, tag = 'scoped memory for tpu_custom_call.1']
    %10 = vsyncpa [#allocation3], 0
    %s11 = scalar_lea.sflag [#allocation3], 1
    %12 = vsyncpa %s11, 0
    %13 = vsyncpa [#allocation5], 0
    %s14 = scalar_lea.sflag [#allocation5], 1
    %15 = vsyncpa %s14, 0
    loop: start=0, step=1, limit=4
    $region2: #{tpu_custom_call.1} parent=1 // loop_pre_header
      _
    $region3: #{tpu_custom_call.1} parent=1 // loop_header
      %s17 = sphi 0, %s21
      %p18 = scmp.ge.s32.totalorder %s17, 4
      %s24 = sphi 0, %s36
      %s25 = sphi 0, %s32
      %s26 = sphi 0, %s24
      %s27 = sphi 0, %s25
      %s28 = sphi 0, %s26
      %s29 = sphi 0, %s27
      %s41 = sphi 0, %s43
      %s44 = sphi 0, %s41
      %s45 = sphi 0, %s44
      %s61 = sphi 0, %s45
      %s65 = sphi 0, %s65
      %s67 = sphi 0, %s65
      %s68 = sphi 0, %s67
      %s82 = sphi 0, %s68
      %s86 = sphi 0, %s86
      %s88 = sphi 0, %s86
      %s89 = sphi 0, %s88
      %s103 = sphi 0, %s89
      %s111 = sphi 0, %s113
      %s114 = sphi 0, %s111
      %s115 = sphi 0, %s114
      %s131 = sphi 0, %s115
      %s139 = sphi 0, %s141
      %s142 = sphi 0, %s139
      %s143 = sphi 0, %s142
      %s159 = sphi 0, %s143
    $region4: #{tpu_custom_call.1} parent=1 // loop_header_branch
      %20 = sbr.rel (%p18) target = $region8
    $region5: #{tpu_custom_call.1} parent=1 // loop_body
      %s22 = ssub.s32 %s17, 1
      %s23 = ssub.s32 %s17, 2
      %s30 = sadd.s32 1, %s25
      %p31 = scmp.ge.s32.totalorder %s30, 1
      %s32 = scalar_select %p31, 0, %s30
      %s33 = sadd.s32 1, %s24
      %s34 = scalar_select %p31, %s33, %s24
      %p35 = scmp.ge.s32.totalorder %s34, 2
      %s36 = scalar_select %p35, 0, %s34
      %s37 = ssub.s32 %s24, %s36
      %s38 = ssub.s32 %s25, %s32
      %s39 = sor.u32 %s37, %s38
      %p40 = scmp.eq.s32.totalorder %s39, 0
      %s42 = sadd.s32 %s41, 1
      %s43 = scalar_select %p40, %s41, %s42
      %p46 = pneg %p40
      %p47 = scmp.eq.s32.totalorder %s17, 1
      %p48 = por %p46, %p47
      %p49 = scmp.ne.s32.totalorder %s41, %s44
      %p50 = scmp.eq.s32.totalorder %s17, 0
      %p51 = por %p49, %p50
      %p52 = scmp.ne.s32.totalorder %s41, %s44
      %p53 = scmp.eq.s32.totalorder %s22, 1
      %p54 = por %p52, %p53
      %p55 = scmp.ne.s32.totalorder %s44, %s45
      %p56 = scmp.eq.s32.totalorder %s22, 0
      %p57 = por %p55, %p56
      %p58 = scmp.ne.s32.totalorder %s44, %s45
      %p59 = scmp.eq.s32.totalorder %s23, 1
      %p60 = por %p58, %p59
      %p62 = scmp.ne.s32.totalorder %s45, %s61
      %p63 = scmp.eq.s32.totalorder %s23, 0
      %p64 = por %p62, %p63
      %s66 = sadd.s32 %s65, 1
      %p69 = scmp.eq.s32.totalorder %s17, 1
      %p70 = scmp.ne.s32.totalorder %s65, %s67
      %p71 = scmp.eq.s32.totalorder %s17, 0
      %p72 = por %p70, %p71
      %p73 = scmp.ne.s32.totalorder %s65, %s67
      %p74 = scmp.eq.s32.totalorder %s22, 1
      %p75 = por %p73, %p74
      %p76 = scmp.ne.s32.totalorder %s67, %s68
      %p77 = scmp.eq.s32.totalorder %s22, 0
      %p78 = por %p76, %p77
      %p79 = scmp.ne.s32.totalorder %s67, %s68
      %p80 = scmp.eq.s32.totalorder %s23, 1
      %p81 = por %p79, %p80
      %p83 = scmp.ne.s32.totalorder %s68, %s82
      %p84 = scmp.eq.s32.totalorder %s23, 0
      %p85 = por %p83, %p84
      %s87 = sadd.s32 %s86, 1
      %p90 = scmp.eq.s32.totalorder %s17, 1
      %p91 = scmp.ne.s32.totalorder %s86, %s88
      %p92 = scmp.eq.s32.totalorder %s17, 0
      %p93 = por %p91, %p92
      %p94 = scmp.ne.s32.totalorder %s86, %s88
      %p95 = scmp.eq.s32.totalorder %s22, 1
      %p96 = por %p94, %p95
      %p97 = scmp.ne.s32.totalorder %s88, %s89
      %p98 = scmp.eq.s32.totalorder %s22, 0
      %p99 = por %p97, %p98
      %p100 = scmp.ne.s32.totalorder %s88, %s89
      %p101 = scmp.eq.s32.totalorder %s23, 1
      %p102 = por %p100, %p101
      %p104 = scmp.ne.s32.totalorder %s89, %s103
      %p105 = scmp.eq.s32.totalorder %s23, 0
      %p106 = por %p104, %p105
      %s107 = ssub.s32 %s24, %s36
      %s108 = ssub.s32 %s25, %s32
      %s109 = sor.u32 %s107, %s108
      %p110 = scmp.eq.s32.totalorder %s109, 0
      %s112 = sadd.s32 %s111, 1
      %s113 = scalar_select %p110, %s111, %s112
      %p116 = pneg %p110
      %p117 = scmp.eq.s32.totalorder %s17, 1
      %p118 = por %p116, %p117
      %p119 = scmp.ne.s32.totalorder %s111, %s114
      %p120 = scmp.eq.s32.totalorder %s17, 0
      %p121 = por %p119, %p120
      %p122 = scmp.ne.s32.totalorder %s111, %s114
      %p123 = scmp.eq.s32.totalorder %s22, 1
      %p124 = por %p122, %p123
      %p125 = scmp.ne.s32.totalorder %s114, %s115
      %p126 = scmp.eq.s32.totalorder %s22, 0
      %p127 = por %p125, %p126
      %p128 = scmp.ne.s32.totalorder %s114, %s115
      %p129 = scmp.eq.s32.totalorder %s23, 1
      %p130 = por %p128, %p129
      %p132 = scmp.ne.s32.totalorder %s115, %s131
      %p133 = scmp.eq.s32.totalorder %s23, 0
      %p134 = por %p132, %p133
      %s135 = ssub.s32 %s24, %s36
      %s136 = ssub.s32 %s25, %s32
      %s137 = sor.u32 %s135, %s136
      %p138 = scmp.eq.s32.totalorder %s137, 0
      %s140 = sadd.s32 %s139, 1
      %s141 = scalar_select %p138, %s139, %s140
      %p144 = pneg %p138
      %p145 = scmp.eq.s32.totalorder %s17, 1
      %p146 = por %p144, %p145
      %p147 = scmp.ne.s32.totalorder %s139, %s142
      %p148 = scmp.eq.s32.totalorder %s17, 0
      %p149 = por %p147, %p148
      %p150 = scmp.ne.s32.totalorder %s139, %s142
      %p151 = scmp.eq.s32.totalorder %s22, 1
      %p152 = por %p150, %p151
      %p153 = scmp.ne.s32.totalorder %s142, %s143
      %p154 = scmp.eq.s32.totalorder %s22, 0
      %p155 = por %p153, %p154
      %p156 = scmp.ne.s32.totalorder %s142, %s143
      %p157 = scmp.eq.s32.totalorder %s23, 1
      %p158 = por %p156, %p157
      %p160 = scmp.ne.s32.totalorder %s143, %s159
      %p161 = scmp.eq.s32.totalorder %s23, 0
      %p162 = por %p160, %p161
      %p163 = scmp.le.s32.totalorder 1, %s17
      %p164 = scmp.lt.s32.totalorder %s17, 3
      %p165 = pnand %p163, %p164
      %p166 = pneg %p165
      // Predicated region
      $region9: #{tpu_custom_call.1} parent=5 // pred_check
        _
      $region10: #{tpu_custom_call.1} parent=5 // pred_check_branch
        %168 = sbr.rel (%p165) target = $region12
      $region11: #{tpu_custom_call.1} parent=5 // pred_region
        %s169 = ssub.s32 %s17, 1
        // Predicated region
        $region13: #{tpu_custom_call.1} parent=11 // pred_check
          %p170 = pneg %p78
        $region14: #{tpu_custom_call.1} parent=11 // pred_check_branch
          %172 = sbr.rel (%p170) target = $region16
        $region15: #{tpu_custom_call.1} parent=11 // pred_region
          _
        $region16: #{tpu_custom_call.1} parent=11 // pred_fallthru
          _
        // Predicated region
        $region17: #{tpu_custom_call.1} parent=11 // pred_check
          %p173 = pneg %p99
        $region18: #{tpu_custom_call.1} parent=11 // pred_check_branch
          %175 = sbr.rel (%p173) target = $region20
        $region19: #{tpu_custom_call.1} parent=11 // pred_region
          _
        $region20: #{tpu_custom_call.1} parent=11 // pred_fallthru
          _
      $region12: #{tpu_custom_call.1} parent=5 // pred_fallthru
        _
      %p176 = scmp.lt.s32.totalorder %s17, 2
      // Predicated region
      $region21: #{tpu_custom_call.1} parent=5 // pred_check
        %p177 = pneg %p176
      $region22: #{tpu_custom_call.1} parent=5 // pred_check_branch
        %179 = sbr.rel (%p177) target = $region24
      $region23: #{tpu_custom_call.1} parent=5 // pred_region
        // Predicated region
        $region25: #{tpu_custom_call.1} parent=23 // pred_check
          %p180 = pneg %p51
        $region26: #{tpu_custom_call.1} parent=23 // pred_check_branch
          %182 = sbr.rel (%p180) target = $region28
        $region27: #{tpu_custom_call.1} parent=23 // pred_region
          %s183 = smul.u32 2, %s25
          %p184 = scmp.lt.s32.totalorder %s24, 1
          %s185 = scalar_select %p184, %s24, 1
          %p186 = scmp.lt.s32.totalorder %s183, 1
          %s187 = scalar_select %p186, %s183, 1
          %s188 = smul.addr %s185, 2
          %s189 = sadd.s32 %s187, %s188
          %s190 = smul.addr %s189, 4
          %s191 = scalar_lea.vmem %s0, %s190
          %s192 = smul.u32 2, %s25
        $region28: #{tpu_custom_call.1} parent=23 // pred_fallthru
          _
      $region24: #{tpu_custom_call.1} parent=5 // pred_fallthru
        _
      %p193 = scmp.le.s32.totalorder 1, %s17
      %p194 = scmp.lt.s32.totalorder %s17, 3
      %p195 = pnand %p193, %p194
      %p196 = pneg %p195
      // Predicated region
      $region29: #{tpu_custom_call.1} parent=5 // pred_check
        _
      $region30: #{tpu_custom_call.1} parent=5 // pred_check_branch
        %198 = sbr.rel (%p195) target = $region32
      $region31: #{tpu_custom_call.1} parent=5 // pred_region
        %s199 = ssub.s32 %s17, 1
        %s200 = smul.u32 2, %s27
        %p201 = scmp.lt.s32.totalorder %s26, 1
        %s202 = scalar_select %p201, %s26, 1
        %p203 = scmp.lt.s32.totalorder %s200, 1
        %s204 = scalar_select %p203, %s200, 1
        %s205 = smul.addr %s202, 2
        %s206 = sadd.s32 %s204, %s205
        %s207 = smul.addr %s206, 4
        %s208 = scalar_lea.vmem %s0, %s207
        %p209 = pneg %p57
        %p210 = pneg %p54
        %p211 = pneg %p78
        %p212 = pneg %p75
        %p213 = pneg %p99
        %p214 = pneg %p96
        %p215 = pneg %p127
        %p216 = pneg %p124
        %s217 = sand.u32 %s114, 1
        %s218 = scalar_lea.sflag [#allocation3], %s217
        %s219 = sand.u32 %s114, 1
        %s220 = smul.addr %s219, 16
        %s221 = scalar_lea.vmem [#allocation2], %s220
        %p222 = pneg %p155
        %p223 = pneg %p152
        %s224 = sand.u32 %s142, 1
        %s225 = scalar_lea.sflag [#allocation5], %s224
        %s226 = sand.u32 %s142, 1
        %s227 = smul.addr %s226, 16
        %s228 = scalar_lea.vmem [#allocation4], %s227
        %s229 = smul.u32 2, %s27
        %p230 = scmp.lt.s32.totalorder %s26, 1
        %s231 = scalar_select %p230, %s26, 1
        %p232 = scmp.lt.s32.totalorder %s229, 1
        %s233 = scalar_select %p232, %s229, 1
        %s234 = smul.addr %s231, 2
        %s235 = sadd.s32 %s233, %s234
        %s236 = smul.addr %s235, 4
        %s237 = scalar_lea.vmem %s0, %s236
        %s238 = smul.u32 2, %s27
        %s239 = smul.u32 2, %s27
        %s240 = smul.u32 2, %s27
        %v241 = vld [vmem:[%s237] sm:$0xff]
        %v242 = vld [vmem:[%s1] sm:$0xff]
        %v243 = vld [vmem:[%s1 + $0x8] sm:$0xff]
        %v244 = vld [vmem:[%s2] sm:$0xff]
        %v245 = vld [vmem:[%s2 + $0x8] sm:$0xff]
        %247 = vset.pattern.permute.xlu0 0
        %248 = vperm.xlu0 %247, %v244
        %v249 = vpop.permute.xlu0 %248
        %252 = vset.pattern.permute.xlu0 0
        %253 = vperm.xlu0 %252, %v245
        %v254 = vpop.permute.xlu0 %253
        %v257 = vcombine.high %v241, %v241
        %vm258 = vcmask 31744
        %v260 = vsel %vm258, %v242, 0
        %v263 = vsel %vm258, %v243, 0
        %vm265 = vcmask 1043456
        %v266 = vsel %vm265, %v241, 0
        %v268 = vsel %vm265, %v257, 0
        %270 = vmatprep.subr.mxu0 0.0
        %271 = vmatpush1.msra.mxu0 0.0
        %272 = vmatprep.subr.mxu0 0.0
        %273 = vmatpush1.msra.mxu0 0.0
        %274 = vmatprep.subr.mxu0 0.0
        %275 = vmatpush1.msra.mxu0 0.0
        %276 = vmatprep.subr.mxu0 0.0
        %277 = vmatpush1.msra.mxu0 0.0
        %278 = vmatprep.subr.mxu0 0.0
        %279 = vmatpush1.msra.mxu0 0.0
        %280 = vmatprep.subr.mxu0 0.0
        %281 = vmatpush1.msra.mxu0 0.0
        %282 = vmatprep.subr.mxu0 0.0
        %283 = vmatpush1.msra.mxu0 0.0
        %284 = vmatprep.subr.mxu0 0.0
        %285 = vmatpush1.msra.mxu0 0.0
        %286 = vmatprep.subr.mxu0 0.0
        %287 = vmatpush1.msra.mxu0 0.0
        %288 = vmatprep.subr.mxu0 0.0
        %289 = vmatpush1.msra.mxu0 0.0
        %290 = vmatprep.subr.mxu0 0.0
        %291 = vmatpush1.msra.mxu0 0.0
        %292 = vmatprep.subr.mxu0 0.0
        %293 = vmatpush1.msra.mxu0 0.0
        %294 = vmatprep.subr.mxu0 0.0
        %295 = vmatpush1.msra.mxu0 0.0
        %296 = vmatprep.subr.mxu0 0.0
        %297 = vmatpush1.msra.mxu0 0.0
        %298 = vmatprep.subr.mxu0 0.0
        %299 = vmatpush1.msra.mxu0 0.0
        %300 = vmatprep.subr.mxu0 %v268
        %301 = vmatpush1.msra.mxu0 %v266
        %302 = vmatprep.subr.mxu0 0.0
        %303 = vmatpush2.msra.mxu0 0.0
        %304 = vmatprep.subr.mxu0 0.0
        %305 = vmatpush2.msra.mxu0 0.0
        %306 = vmatprep.subr.mxu0 0.0
        %307 = vmatpush2.msra.mxu0 0.0
        %308 = vmatprep.subr.mxu0 0.0
        %309 = vmatpush2.msra.mxu0 0.0
        %310 = vmatprep.subr.mxu0 0.0
        %311 = vmatpush2.msra.mxu0 0.0
        %312 = vmatprep.subr.mxu0 0.0
        %313 = vmatpush2.msra.mxu0 0.0
        %314 = vmatprep.subr.mxu0 0.0
        %315 = vmatpush2.msra.mxu0 0.0
        %316 = vmatprep.subr.mxu0 0.0
        %317 = vmatpush2.msra.mxu0 0.0
        %318 = vmatprep.subr.mxu0 0.0
        %319 = vmatpush2.msra.mxu0 0.0
        %320 = vmatprep.subr.mxu0 0.0
        %321 = vmatpush2.msra.mxu0 0.0
        %322 = vmatprep.subr.mxu0 0.0
        %323 = vmatpush2.msra.mxu0 0.0
        %324 = vmatprep.subr.mxu0 0.0
        %325 = vmatpush2.msra.mxu0 0.0
        %326 = vmatprep.subr.mxu0 0.0
        %327 = vmatpush2.msra.mxu0 0.0
        %328 = vmatprep.subr.mxu0 0.0
        %329 = vmatpush2.msra.mxu0 0.0
        %330 = vmatprep.subr.mxu0 0.0
        %331 = vmatpush2.msra.mxu0 0.0
        %332 = vmatprep.subr.mxu0 0.0
        %333 = vmatpush2.msra.mxu0 0.0
        %334 = vmatprep.mubr.f32.mxu0 0.0
        %335 = vmatmul.mubr.f32.gmra.mxu0 %v260
        %v336 = vpop.f32.mrf.mxu0
        %v337 = vadd.f32 %v249, %v336
        %v338 = vpop.f32.mrf.mxu0
        %v339 = vadd.f32 %v249, %v338
        %340 = vmatprep.mubr.f32.mxu0 0.0
        %341 = vmatmul.mubr.f32.gmra.mxu0 %v263
        %v342 = vpop.f32.mrf.mxu0
        %v343 = vadd.f32 %v254, %v342
        %v344 = vpop.f32.mrf.mxu0
        %v345 = vadd.f32 %v254, %v344
        %346 = vdwg.mxu0
        %347 = vst [vmem:[%s221] sm:$0xff] %v337
        %348 = vst [vmem:[%s221 + $0x8] sm:$0xff] %v339
        %349 = vst [vmem:[%s228] sm:$0xff] %v343
        %350 = vst [vmem:[%s228 + $0x8] sm:$0xff] %v345
        %s351 = sand.u32 %s114, 1
        %s352 = scalar_lea.sflag [#allocation3], %s351
        %s353 = sand.u32 %s114, 1
        %s354 = smul.addr %s353, 16
        %s355 = scalar_lea.vmem [#allocation2], %s354
        %s356 = sand.u32 %s142, 1
        %s357 = scalar_lea.sflag [#allocation5], %s356
        %s358 = sand.u32 %s142, 1
        %s359 = smul.addr %s358, 16
        %s360 = scalar_lea.vmem [#allocation4], %s359
        // Predicated region
        $region33: #{tpu_custom_call.1} parent=31 // pred_check
          %p361 = pneg %p124
        $region34: #{tpu_custom_call.1} parent=31 // pred_check_branch
          %363 = sbr.rel (%p361) target = $region36
        $region35: #{tpu_custom_call.1} parent=31 // pred_region
          %s364 = smul.u32 2, %s27
          %s366 = ssub.s32 256, 256
          %367 = vsyncadd %s352, %s366
          %s368 = smul.addr %s26, 2
          %s369 = sadd.s32 %s364, %s368
          %s370 = smul.addr %s369, 128
          %s371 = scalar_lea.hbm %s3, %s370
          %s373 = sshll.u32 %s355, 4
          %s374 = int_to_ptr.vmem [resolvable:$true] %s373
          %376 = dma.vmem_to_hbm [thread:$0]  %s374, 256, %s371, %s352
        $region36: #{tpu_custom_call.1} parent=31 // pred_fallthru
          _
        // Predicated region
        $region37: #{tpu_custom_call.1} parent=31 // pred_check
          %p377 = pneg %p152
        $region38: #{tpu_custom_call.1} parent=31 // pred_check_branch
          %379 = sbr.rel (%p377) target = $region40
        $region39: #{tpu_custom_call.1} parent=31 // pred_region
          %s380 = smul.u32 2, %s27
          %s382 = ssub.s32 256, 256
          %383 = vsyncadd %s357, %s382
          %s384 = smul.addr %s26, 2
          %s385 = sadd.s32 %s380, %s384
          %s386 = smul.addr %s385, 128
          %s387 = scalar_lea.hbm %s4, %s386
          %s389 = sshll.u32 %s360, 4
          %s390 = int_to_ptr.vmem [resolvable:$true] %s389
          %392 = dma.vmem_to_hbm [thread:$0]  %s390, 256, %s387, %s357
        $region40: #{tpu_custom_call.1} parent=31 // pred_fallthru
          _
      $region32: #{tpu_custom_call.1} parent=5 // pred_fallthru
        _
      %p393 = scmp.le.s32.totalorder 2, %s17
      // Predicated region
      $region41: #{tpu_custom_call.1} parent=5 // pred_check
        %p394 = pneg %p393
      $region42: #{tpu_custom_call.1} parent=5 // pred_check_branch
        %396 = sbr.rel (%p394) target = $region44
      $region43: #{tpu_custom_call.1} parent=5 // pred_region
        %s397 = ssub.s32 %s17, 2
        // Predicated region
        $region45: #{tpu_custom_call.1} parent=43 // pred_check
          %p398 = pneg %p130
        $region46: #{tpu_custom_call.1} parent=43 // pred_check_branch
          %400 = sbr.rel (%p398) target = $region48
        $region47: #{tpu_custom_call.1} parent=43 // pred_region
          %s401 = sand.u32 %s115, 1
          %s402 = scalar_lea.sflag [#allocation3], %s401
          %s403 = sand.u32 %s115, 1
          %s404 = smul.addr %s403, 16
          %s405 = scalar_lea.vmem [#allocation2], %s404
          %406 = dma.done %s402, 256
        $region48: #{tpu_custom_call.1} parent=43 // pred_fallthru
          _
        // Predicated region
        $region49: #{tpu_custom_call.1} parent=43 // pred_check
          %p407 = pneg %p158
        $region50: #{tpu_custom_call.1} parent=43 // pred_check_branch
          %409 = sbr.rel (%p407) target = $region52
        $region51: #{tpu_custom_call.1} parent=43 // pred_region
          %s410 = sand.u32 %s143, 1
          %s411 = scalar_lea.sflag [#allocation5], %s410
          %s412 = sand.u32 %s143, 1
          %s413 = smul.addr %s412, 16
          %s414 = scalar_lea.vmem [#allocation4], %s413
          %415 = dma.done %s411, 256
        $region52: #{tpu_custom_call.1} parent=43 // pred_fallthru
          _
      $region44: #{tpu_custom_call.1} parent=5 // pred_fallthru
        _
    $region6: #{tpu_custom_call.1} parent=1 // loop_footer
      %s21 = sadd.s32 1, %s17
    $region7: #{tpu_custom_call.1} parent=1 // loop_footer_branch
      %16 = sbr.rel target = $region3
    $region8: #{tpu_custom_call.1} parent=1 // loop_exit
      _
    %416 = vsyncpa [#allocation3], 1
    %s417 = scalar_lea.sflag [#allocation3], 1
    %418 = vsyncpa %s417, 1
    %419 = vsyncpa [#allocation5], 1
    %s420 = scalar_lea.sflag [#allocation5], 1
    %421 = vsyncpa %s420, 1

</llo_original>
